<compile_context>
chip_gen: v5e
topology: v5e:2x2
jax: 0.10.0
libtpu: 0.0.40
codegen_flags: <defaults>
</compile_context>

<pallas_src>
import functools
import numpy as np
import jax
import jax.numpy as jnp
from jax.experimental import pallas as pl
from jax.experimental.pallas import tpu as pltpu

BN_EPS = 1e-5


# ----------------------------------------------------------------------------
# helpers
# ----------------------------------------------------------------------------
def _round_up(x, m):
    return ((x + m - 1) // m) * m


def _pad_last(a, target):
    pad = target - a.shape[-1]
    if pad == 0:
        return a
    cfg = [(0, 0)] * (a.ndim - 1) + [(0, pad)]
    return jnp.pad(a, cfg)


def _pick_tile_m(M, target):
    """Largest divisor of M that is a multiple of 8 and <= target (fallback M)."""
    t = min(target, M)
    for cand in range(t, 7, -1):
        if M % cand == 0 and cand % 8 == 0:
            return cand
    return M


# ----------------------------------------------------------------------------
# Pass 1 kernel: single big-K matmul + per-tile BN partial statistics
# ----------------------------------------------------------------------------
def _conv_stats_kernel(p_ref, w_ref, conv_ref, part_ref):
    # (TILE_M, Kp) bf16 @ (Kp, Cp) bf16 -> f32 on the MXU, one matmul per tile.
    acc = jnp.dot(p_ref[...], w_ref[...], preferred_element_type=jnp.float32)
    conv_ref[...] = acc

    n = acc.shape[0]
    s = jnp.sum(acc, axis=0, keepdims=True)                 # (1, Cp) tile sum
    mu = s * (1.0 / n)                                      # tile mean
    m2 = jnp.sum((acc - mu) ** 2, axis=0, keepdims=True)    # centered M2
    part_ref[0, 0:1, :] = s
    part_ref[0, 1:2, :] = m2


# ----------------------------------------------------------------------------
# Pass 2 kernel: normalize (folded scale/shift) + residual + ReLU
# ----------------------------------------------------------------------------
def _bn_act_kernel(*refs, apply_relu, has_residual):
    if has_residual:
        conv_ref, scale_ref, shift_ref, res_ref, out_ref = refs
    else:
        conv_ref, scale_ref, shift_ref, out_ref = refs

    y = conv_ref[...] * scale_ref[...] + shift_ref[...]
    if has_residual:
        y = y + res_ref[...]
    if apply_relu:
        y = jnp.maximum(y, 0.0)
    out_ref[...] = y


# ----------------------------------------------------------------------------
# conv (as folded-K matmul) + BatchNorm(batch stats) [+ residual] [+ ReLU]
# ----------------------------------------------------------------------------
def conv_bn_pallas(patches, w2, gamma, beta, residual=None, apply_relu=True,
                   max_tile_m=512):
    """patches: (M, K) ; w2: (K, Cout) ; gamma/beta: (Cout,).
    residual (optional): (M, Cp) f32 already channel-padded.
    Returns (M, Cp) f32 (padded channels are zero)."""
    M, K = patches.shape
    Cout = w2.shape[1]
    Kp = _round_up(K, 128)
    Cp = _round_up(Cout, 128)
    tile_m = _pick_tile_m(M, max_tile_m)
    n_tiles = M // tile_m

    # bf16 inputs, zero-padded to lane-dense K / Cout.
    p = _pad_last(patches.astype(jnp.bfloat16), Kp)                       # (M, Kp)
    w = jnp.pad(w2.astype(jnp.bfloat16), ((0, Kp - K), (0, Cp - Cout)))   # (Kp, Cp)

    # ---- pass 1: conv + per-tile partial stats ------------------------------
    conv_out, partials = pl.pallas_call(
        _conv_stats_kernel,
        out_shape=(jax.ShapeDtypeStruct((M, Cp), jnp.float32),
                   jax.ShapeDtypeStruct((n_tiles, 2, Cp), jnp.float32)),
        grid=(n_tiles,),
        in_specs=[
            pl.BlockSpec((tile_m, Kp), lambda i: (i, 0)),
            pl.BlockSpec((Kp, Cp), lambda i: (0, 0)),       # weights stay resident
        ],
        out_specs=(
            pl.BlockSpec((tile_m, Cp), lambda i: (i, 0)),
            pl.BlockSpec((1, 2, Cp), lambda i: (i, 0, 0)),
        ),
        compiler_params=pltpu.CompilerParams(
            dimension_semantics=("parallel",)),
        cost_estimate=pl.CostEstimate(
            flops=2 * M * Kp * Cp,
            transcendentals=0,
            bytes_accessed=M * Kp * 2 + Kp * Cp * 2 + M * Cp * 4
                           + n_tiles * 2 * Cp * 4),
    )(p, w)

    # ---- combine partials (Chan's parallel variance), fold gamma/beta ------
    tsum = partials[:, 0, :]                                # (T, Cp)
    tm2 = partials[:, 1, :]                                 # (T, Cp)
    mean = tsum.sum(axis=0) / M                             # (Cp,)
    tmean = tsum / tile_m
    m2_total = tm2.sum(axis=0) + tile_m * ((tmean - mean[None, :]) ** 2).sum(axis=0)
    var = m2_total / M                                      # biased, like BN

    gamma_p = _pad_last(gamma.astype(jnp.float32).reshape(1, Cout), Cp)
    beta_p = _pad_last(beta.astype(jnp.float32).reshape(1, Cout), Cp)
    scale = gamma_p * jax.lax.rsqrt(var[None, :] + BN_EPS)  # (1, Cp)
    shift = beta_p - mean[None, :] * scale                  # (1, Cp)

    # ---- pass 2: normalize + residual + relu --------------------------------
    inputs = [conv_out, scale, shift]
    in_specs = [
        pl.BlockSpec((tile_m, Cp), lambda i: (i, 0)),
        pl.BlockSpec((1, Cp), lambda i: (0, 0)),
        pl.BlockSpec((1, Cp), lambda i: (0, 0)),
    ]
    if residual is not None:
        inputs.append(residual.astype(jnp.float32))
        in_specs.append(pl.BlockSpec((tile_m, Cp), lambda i: (i, 0)))

    kernel = functools.partial(_bn_act_kernel, apply_relu=apply_relu,
                               has_residual=residual is not None)
    n_elem_ins = 2 + (1 if residual is not None else 0)

    out = pl.pallas_call(
        kernel,
        out_shape=jax.ShapeDtypeStruct((M, Cp), jnp.float32),
        grid=(n_tiles,),
        in_specs=in_specs,
        out_specs=pl.BlockSpec((tile_m, Cp), lambda i: (i, 0)),
        compiler_params=pltpu.CompilerParams(
            dimension_semantics=("parallel",)),
        cost_estimate=pl.CostEstimate(
            flops=4 * M * Cp,
            transcendentals=0,
            bytes_accessed=n_elem_ins * M * Cp * 4 + 2 * Cp * 4),
    )(*inputs)
    return out


# ----------------------------------------------------------------------------
# JAX glue: im2col with taps folded into K, weight re-layout
# ----------------------------------------------------------------------------
def im2col_3x3(x_nhwc, stride):
    """x: (N,H,W,C) -> (N*Ho*Wo, 9*C) patches for a 3x3 conv, padding=1."""
    N, H, W, C = x_nhwc.shape
    xp = jnp.pad(x_nhwc, ((0, 0), (1, 1), (1, 1), (0, 0)))
    Ho = (H + 2 - 3) // stride + 1
    Wo = (W + 2 - 3) // stride + 1
    cols = []
    for dh in range(3):
        for dw in range(3):
            patch = xp[:, dh:dh + stride * (Ho - 1) + 1:stride,
                          dw:dw + stride * (Wo - 1) + 1:stride, :]
            cols.append(patch.reshape(N * Ho * Wo, C))
    return jnp.concatenate(cols, axis=1), Ho, Wo            # K index = tap*C + c


def fold_weights_3x3(w_oihw):
    """(Cout, Cin, 3, 3) -> (9*Cin, Cout), K order matching im2col_3x3."""
    Cout, Cin = w_oihw.shape[0], w_oihw.shape[1]
    return w_oihw.transpose(2, 3, 1, 0).reshape(9 * Cin, Cout)


# ----------------------------------------------------------------------------
# BasicBlock forward
# ----------------------------------------------------------------------------
def basic_block_forward(x_nchw, params, stride, max_tile_m=512):
    x = jnp.transpose(x_nchw, (0, 2, 3, 1))                 # NCHW -> NHWC
    N, H, W, Cin = x.shape
    Cout = params["conv1_w"].shape[0]
    Cp = _round_up(Cout, 128)

    # conv1 (3x3, stride, pad=1) + bn1 + relu
    p1, Ho, Wo = im2col_3x3(x, stride)
    h1 = conv_bn_pallas(p1, fold_weights_3x3(params["conv1_w"]),
                        params["bn1_g"], params["bn1_b"],
                        apply_relu=True, max_tile_m=max_tile_m)   # (M1, Cp)
    M1 = N * Ho * Wo
    h1_nhwc = h1[:, :Cout].reshape(N, Ho, Wo, Cout)

    # residual / downsample path
    if stride != 1 or Cin != Cout:
        xs = x[:, ::stride, ::stride, :].reshape(M1, Cin)
        wd = params["convd_w"][:, :, 0, 0].T                # (Cin, Cout), 1x1 conv
        residual = conv_bn_pallas(xs, wd, params["bnd_g"], params["bnd_b"],
                                  apply_relu=False, max_tile_m=max_tile_m)
    else:
        residual = _pad_last(x.reshape(M1, Cin).astype(jnp.float32), Cp)

    # conv2 (3x3, stride=1, pad=1) + bn2 + residual add + relu
    p2, _, _ = im2col_3x3(h1_nhwc, 1)
    out = conv_bn_pallas(p2, fold_weights_3x3(params["conv2_w"]),
                         params["bn2_g"], params["bn2_b"],
                         residual=residual, apply_relu=True,
                         max_tile_m=max_tile_m)

    out = out[:, :Cout].reshape(N, Ho, Wo, Cout).transpose(0, 3, 1, 2)  # -> NCHW
    return out


# ----------------------------------------------------------------------------
# Pure-JAX reference (mirrors the PyTorch module, training-mode BN)
# ----------------------------------------------------------------------------
def reference_forward(x, params, stride):
    def conv(x, w, s, pad):
        return jax.lax.conv_general_dilated(
            x, w, (s, s), [(pad, pad), (pad, pad)],
            dimension_numbers=("NCHW", "OIHW", "NCHW"))

    def bn(x, g, b):
        mean = x.mean(axis=(0, 2, 3), keepdims=True)
        var = ((x - mean) ** 2).mean(axis=(0, 2, 3), keepdims=True)
        xn = (x - mean) * jax.lax.rsqrt(var + BN_EPS)
        return xn * g.reshape(1, -1, 1, 1) + b.reshape(1, -1, 1, 1)

    Cin = x.shape[1]
    Cout = params["conv1_w"].shape[0]
    if stride != 1 or Cin != Cout:
        residual = bn(conv(x, params["convd_w"], stride, 0),
                      params["bnd_g"], params["bnd_b"])
    else:
        residual = x
    out = jax.nn.relu(bn(conv(x, params["conv1_w"], stride, 1),
                         params["bn1_g"], params["bn1_b"]))
    out = bn(conv(out, params["conv2_w"], 1, 1),
             params["bn2_g"], params["bn2_b"])
    return jax.nn.relu(out + residual)


# ----------------------------------------------------------------------------
def make_params(key, in_channels, out_channels, stride):
    ks = jax.random.split(key, 8)
    p = {
        "conv1_w": 0.1 * jax.random.normal(ks[0], (out_channels, in_channels, 3, 3), jnp.float32),
        "bn1_g": 0.5 + jax.random.uniform(ks[1], (out_channels,), jnp.float32),
        "bn1_b": 0.1 * jax.random.normal(ks[2], (out_channels,), jnp.float32),
        "conv2_w": 0.1 * jax.random.normal(ks[3], (out_channels, out_channels, 3, 3), jnp.float32),
        "bn2_g": 0.5 + jax.random.uniform(ks[4], (out_channels,), jnp.float32),
        "bn2_b": 0.1 * jax.random.normal(ks[5], (out_channels,), jnp.float32),
    }
    if stride != 1 or in_channels != out_channels:
        p["convd_w"] = 0.1 * jax.random.normal(ks[6], (out_channels, in_channels, 1, 1), jnp.float32)
        p["bnd_g"] = 0.5 + jax.random.uniform(ks[7], (out_channels,), jnp.float32)
        p["bnd_b"] = jnp.zeros((out_channels,), jnp.float32)
    return p


if __name__ == "__main__":
    key = jax.random.PRNGKey(0)
    k_x, k_p1, k_p2 = jax.random.split(key, 3)

    # Tolerances are set for bf16 conv inputs (f32 accumulation).
    RTOL = ATOL = 5e-2

    # Case 1: downsampling block (stride=2, 4 -> 8 channels), default tiling.
    x = jax.random.normal(k_x, (2, 4, 16, 16), jnp.float32)   # NCHW, like PyTorch
    params_ds = make_params(k_p1, 4, 8, stride=2)
    out_ds = jax.block_until_ready(basic_block_forward(x, params_ds, stride=2))
    ref_ds = reference_forward(x, params_ds, stride=2)
    np.testing.assert_allclose(np.asarray(out_ds), np.asarray(ref_ds),
                               rtol=RTOL, atol=ATOL)

    # Case 2: identity-residual block (stride=1, 4 -> 4 channels); force a
    # small tile (M=512 -> 4 grid steps) to exercise multi-tile BN statistics.
    params_id = make_params(k_p2, 4, 4, stride=1)
    out_id = jax.block_until_ready(
        basic_block_forward(x, params_id, stride=1, max_tile_m=128))
    ref_id = reference_forward(x, params_id, stride=1)
    np.testing.assert_allclose(np.asarray(out_id), np.asarray(ref_id),
                               rtol=RTOL, atol=ATOL)

    assert out_ds.shape == (2, 8, 8, 8) and out_id.shape == (2, 4, 16, 16)
    print("KERNEL_OK")
</pallas_src>

<mosaic_0001>
module attributes {stable_mosaic.version = 11 : i64} {
  func.func @_conv_stats_kernel(%arg0: i32, %arg1: memref<128x128xbf16, #tpu.memory_space<vmem>>, %arg2: memref<128x128xbf16, #tpu.memory_space<vmem>>, %arg3: memref<128x128xf32, #tpu.memory_space<vmem>>, %arg4: memref<1x2x128xf32, #tpu.memory_space<vmem>>) attributes {dimension_semantics = [#tpu.dimension_semantics<parallel>], iteration_bounds = array<i64: 1>, scalar_prefetch = 0 : i64, scratch_operands = 0 : i64, tpu.core_type = #tpu.core_type<tc>, window_params = [{transform_indices = @transform_0, window_bounds = array<i64: 128, 128>}, {pipeline_mode = #tpu.pipeline_mode<synchronous>, transform_indices = @transform_1, window_bounds = array<i64: 128, 128>}, {transform_indices = @transform_2, window_bounds = array<i64: 128, 128>}, {transform_indices = @transform_3, window_bounds = array<i64: 1, 2, 128>}]} {
    %c0 = arith.constant 0 : index
    %c0_0 = arith.constant 0 : index
    %0 = vector.load %arg1[%c0, %c0_0] : memref<128x128xbf16, #tpu.memory_space<vmem>>, vector<128x128xbf16>
    %c0_1 = arith.constant 0 : index
    %c0_2 = arith.constant 0 : index
    %1 = vector.load %arg2[%c0_1, %c0_2] : memref<128x128xbf16, #tpu.memory_space<vmem>>, vector<128x128xbf16>
    %cst = arith.constant dense<0.000000e+00> : vector<128x128xf32>
    %2 = tpu.matmul %0, %1, %cst {dimension_numbers = #tpu.dot_dimension_numbers<[1], [0], [0], [1], [0, 0, 1, 1], [], []>} : vector<128x128xbf16>, vector<128x128xbf16>, vector<128x128xf32> -> vector<128x128xf32>
    %c0_3 = arith.constant 0 : index
    %c0_4 = arith.constant 0 : index
    %3 = vector.load %arg3[%c0_3, %c0_4] : memref<128x128xf32, #tpu.memory_space<vmem>>, vector<128x128xf32>
    tpu.vector_store %arg3[%c0_3, %c0_4], %2 {strides = array<i32>} : memref<128x128xf32, #tpu.memory_space<vmem>>, vector<128x128xf32>,
    %cst_5 = arith.constant dense<0.000000e+00> : vector<128xf32>
    %4 = vector.multi_reduction <add>, %2, %cst_5 [0] : vector<128x128xf32> to vector<128xf32>
    %5 = vector.shape_cast %4 : vector<128xf32> to vector<1x128xf32>
    %cst_6 = arith.constant 7.812500e-03 : f32
    %6 = vector.broadcast %cst_6 : f32 to vector<1x128xf32>
    %7 = arith.mulf %5, %6 : vector<1x128xf32>
    %8 = vector.broadcast %7 : vector<1x128xf32> to vector<128x128xf32>
    %9 = arith.subf %2, %8 : vector<128x128xf32>
    %10 = arith.mulf %9, %9 : vector<128x128xf32>
    %cst_7 = arith.constant dense<0.000000e+00> : vector<128xf32>
    %11 = vector.multi_reduction <add>, %10, %cst_7 [0] : vector<128x128xf32> to vector<128xf32>
    %12 = vector.shape_cast %11 : vector<128xf32> to vector<1x128xf32>
    %c0_8 = arith.constant 0 : index
    %c0_9 = arith.constant 0 : index
    %c0_10 = arith.constant 0 : index
    %13 = vector.load %arg4[%c0_8, %c0_9, %c0_10] : memref<1x2x128xf32, #tpu.memory_space<vmem>>, vector<1x1x128xf32>
    %14 = vector.shape_cast %13 : vector<1x1x128xf32> to vector<1x128xf32>
    %15 = vector.shape_cast %5 : vector<1x128xf32> to vector<1x1x128xf32>
    tpu.vector_store %arg4[%c0_8, %c0_9, %c0_10], %15 {strides = array<i32>} : memref<1x2x128xf32, #tpu.memory_space<vmem>>, vector<1x1x128xf32>,
    %c0_11 = arith.constant 0 : index
    %c1 = arith.constant 1 : index
    %c0_12 = arith.constant 0 : index
    %16 = vector.load %arg4[%c0_11, %c1, %c0_12] : memref<1x2x128xf32, #tpu.memory_space<vmem>>, vector<1x1x128xf32>
    %17 = vector.shape_cast %16 : vector<1x1x128xf32> to vector<1x128xf32>
    %18 = vector.shape_cast %12 : vector<1x128xf32> to vector<1x1x128xf32>
    tpu.vector_store %arg4[%c0_11, %c1, %c0_12], %18 {strides = array<i32>} : memref<1x2x128xf32, #tpu.memory_space<vmem>>, vector<1x1x128xf32>,
    return
  }
  func.func @transform_0(%arg0: i32) -> (i32, i32) {
    %c0_i32 = arith.constant 0 : i32
    %c0_i32_0 = arith.constant 0 : i32
    return %arg0, %c0_i32 : i32, i32
  }
  func.func @transform_1(%arg0: i32) -> (i32, i32) {
    %c0_i32 = arith.constant 0 : i32
    %c0_i32_0 = arith.constant 0 : i32
    %c0_i32_1 = arith.constant 0 : i32
    return %c0_i32, %c0_i32_0 : i32, i32
  }
  func.func @transform_2(%arg0: i32) -> (i32, i32) {
    %c0_i32 = arith.constant 0 : i32
    %c0_i32_0 = arith.constant 0 : i32
    return %arg0, %c0_i32 : i32, i32
  }
  func.func @transform_3(%arg0: i32) -> (i32, i32, i32) {
    %c0_i32 = arith.constant 0 : i32
    %c0_i32_0 = arith.constant 0 : i32
    %c0_i32_1 = arith.constant 0 : i32
    return %arg0, %c0_i32, %c0_i32_0 : i32, i32, i32
  }
}

</mosaic_0001>

<llo_original>
// kernel: tpu_custom_call.1
$region0: #{tpu_custom_call.1}
  #allocation0 [shape = 'u32[]', space=smem, size = 0x4, offset = 0x4, fixed_abs, tag = 'smem constant byte address 0x4 - core index']
  #allocation1 [shape = 'u32[72,128]{1,0:T(1,128)}', space=vmem, size = 0x9000, scoped, tag = 'internal scratch']
  %s0 = inlined_call_operand.hbm [shape: bf16[128,128], index: 0, kind: input, shape index: {}]
  %s1 = inlined_call_operand.hbm [shape: bf16[128,128], index: 1, kind: input, shape index: {}]
  %s2 = inlined_call_operand.hbm [shape: f32[128,128], index: 2, kind: output, shape index: {0}]
  %s3 = inlined_call_operand.hbm [shape: f32[1,2,128], index: 3, kind: output, shape index: {1}]
  %4 = xla_tuple %s2, %s3
  %s5 = sld [smem:[#allocation0]]
  $region34: #{tpu_custom_call.1} parent=0
    _
  %s7 = ssub.s32 1, %s5
  %s8 = scalar_select 0, %s7, %s5
  $region1: #{tpu_custom_call.1} parent=0
    #allocation2 [shape = 'u8[32768]{0}', space=vmem, size = 0x8000, scoped, tag = 'input window, operand 0, single buffered']
    #allocation3 [shape = 's32[1]{0}', space=sflag, size = 0x4, scoped, tag = 'scoped memory for tpu_custom_call.1']
    #allocation4 [shape = 's32[1]{0}', space=sflag, size = 0x4, scoped, tag = 'scoped memory for tpu_custom_call.1']
    #allocation5 [shape = 'u8[32768]{0}', space=vmem, size = 0x8000, scoped, tag = 'input window, operand 1, single buffered']
    #allocation6 [shape = 's32[1]{0}', space=sflag, size = 0x4, scoped, tag = 'scoped memory for tpu_custom_call.1']
    #allocation7 [shape = 'u8[65536]{0}', space=vmem, size = 0x10000, scoped, tag = 'output window, operand 0, single buffered']
    #allocation8 [shape = 'u8[1024]{0}', space=vmem, size = 0x400, scoped, tag = 'output window, operand 1, single buffered']
    #allocation9 [shape = 's32[1]{0}', space=sflag, size = 0x4, scoped, tag = 'scoped memory for tpu_custom_call.1']
    %9 = vsyncpa [#allocation3], 0
    %10 = vsyncpa [#allocation6], 0
    %11 = vsyncpa [#allocation4], 0
    %12 = vsyncpa [#allocation9], 0
    // Predicated region
    $region2: #{tpu_custom_call.1} parent=1 // pred_check
      _
    $region3: #{tpu_custom_call.1} parent=1 // pred_check_branch
      %14 = sbr.rel (0) target = $region5
    $region4: #{tpu_custom_call.1} parent=1 // pred_region
      %16 = vsyncadd [#allocation3], 0
      %s17 = sshll.u32 %s0, 4
      %s18 = int_to_ptr.hbm [resolvable:$true] %s17
      %s19 = sshll.u32 [#allocation2], 4
      %s20 = int_to_ptr.vmem [resolvable:$true] %s19
      %25 = dma.hbm_to_vmem [thread:$0]  %s18, 1024, %s20, [#allocation3], 64, 64, 4
    $region5: #{tpu_custom_call.1} parent=1 // pred_fallthru
      _
    // Predicated region
    $region6: #{tpu_custom_call.1} parent=1 // pred_check
      _
    $region7: #{tpu_custom_call.1} parent=1 // pred_check_branch
      %27 = sbr.rel (0) target = $region9
    $region8: #{tpu_custom_call.1} parent=1 // pred_region
      %29 = vsyncadd [#allocation6], 0
      %s30 = sshll.u32 %s1, 4
      %s31 = int_to_ptr.hbm [resolvable:$true] %s30
      %s32 = sshll.u32 [#allocation5], 4
      %s33 = int_to_ptr.vmem [resolvable:$true] %s32
      %38 = dma.hbm_to_vmem [thread:$0]  %s31, 1024, %s33, [#allocation6], 64, 64, 4
    $region9: #{tpu_custom_call.1} parent=1 // pred_fallthru
      _
    // Predicated region
    $region10: #{tpu_custom_call.1} parent=1 // pred_check
      _
    $region11: #{tpu_custom_call.1} parent=1 // pred_check_branch
      %40 = sbr.rel (0) target = $region13
    $region12: #{tpu_custom_call.1} parent=1 // pred_region
      %42 = dma.done [#allocation3], 1024
    $region13: #{tpu_custom_call.1} parent=1 // pred_fallthru
      _
    // Predicated region
    $region14: #{tpu_custom_call.1} parent=1 // pred_check
      _
    $region15: #{tpu_custom_call.1} parent=1 // pred_check_branch
      %44 = sbr.rel (0) target = $region17
    $region16: #{tpu_custom_call.1} parent=1 // pred_region
      %46 = dma.done [#allocation6], 1024
    $region17: #{tpu_custom_call.1} parent=1 // pred_fallthru
      _
    %v47 = vld [vmem:[#allocation2] sm:$0xf]
    %v48 = vld [vmem:[#allocation2 + $0x4] sm:$0xf]
    %v49 = vld [vmem:[#allocation2 + $0x8] sm:$0xf]
    %v50 = vld [vmem:[#allocation2 + $0xc] sm:$0xf]
    %v51 = vld [vmem:[#allocation2 + $0x10] sm:$0xf]
    %v52 = vld [vmem:[#allocation2 + $0x14] sm:$0xf]
    %v53 = vld [vmem:[#allocation2 + $0x18] sm:$0xf]
    %v54 = vld [vmem:[#allocation2 + $0x1c] sm:$0xf]
    %v55 = vld [vmem:[#allocation2 + $0x20] sm:$0xf]
    %v56 = vld [vmem:[#allocation2 + $0x24] sm:$0xf]
    %v57 = vld [vmem:[#allocation2 + $0x28] sm:$0xf]
    %v58 = vld [vmem:[#allocation2 + $0x2c] sm:$0xf]
    %v59 = vld [vmem:[#allocation2 + $0x30] sm:$0xf]
    %v60 = vld [vmem:[#allocation2 + $0x34] sm:$0xf]
    %v61 = vld [vmem:[#allocation2 + $0x38] sm:$0xf]
    %v62 = vld [vmem:[#allocation2 + $0x3c] sm:$0xf]
    %v63 = vld [vmem:[#allocation5] sm:$0xf]
    %v64 = vld [vmem:[#allocation5 + $0x4] sm:$0xf]
    %v65 = vld [vmem:[#allocation5 + $0x8] sm:$0xf]
    %v66 = vld [vmem:[#allocation5 + $0xc] sm:$0xf]
    %v67 = vld [vmem:[#allocation5 + $0x10] sm:$0xf]
    %v68 = vld [vmem:[#allocation5 + $0x14] sm:$0xf]
    %v69 = vld [vmem:[#allocation5 + $0x18] sm:$0xf]
    %v70 = vld [vmem:[#allocation5 + $0x1c] sm:$0xf]
    %v71 = vld [vmem:[#allocation5 + $0x20] sm:$0xf]
    %v72 = vld [vmem:[#allocation5 + $0x24] sm:$0xf]
    %v73 = vld [vmem:[#allocation5 + $0x28] sm:$0xf]
    %v74 = vld [vmem:[#allocation5 + $0x2c] sm:$0xf]
    %v75 = vld [vmem:[#allocation5 + $0x30] sm:$0xf]
    %v76 = vld [vmem:[#allocation5 + $0x34] sm:$0xf]
    %v77 = vld [vmem:[#allocation5 + $0x38] sm:$0xf]
    %v78 = vld [vmem:[#allocation5 + $0x3c] sm:$0xf]
    %v95 = vunpack.c.l.b16 %v47
    %v96 = vunpack.c.l.b16 %v48
    %v97 = vunpack.c.l.b16 %v49
    %v98 = vunpack.c.l.b16 %v50
    %v99 = vunpack.c.l.b16 %v51
    %v100 = vunpack.c.l.b16 %v52
    %v101 = vunpack.c.l.b16 %v53
    %v102 = vunpack.c.l.b16 %v54
    %v103 = vunpack.c.l.b16 %v55
    %v104 = vunpack.c.l.b16 %v56
    %v105 = vunpack.c.l.b16 %v57
    %v106 = vunpack.c.l.b16 %v58
    %v107 = vunpack.c.l.b16 %v59
    %v108 = vunpack.c.l.b16 %v60
    %v109 = vunpack.c.l.b16 %v61
    %v110 = vunpack.c.l.b16 %v62
    %v111 = vpack.c.b16 %v96, %v95
    %v112 = vpack.c.b16 %v98, %v97
    %v113 = vpack.c.b16 %v100, %v99
    %v114 = vpack.c.b16 %v102, %v101
    %v115 = vpack.c.b16 %v104, %v103
    %v116 = vpack.c.b16 %v106, %v105
    %v117 = vpack.c.b16 %v108, %v107
    %v118 = vpack.c.b16 %v110, %v109
    %v143 = vunpack.c.l.b16 %v63
    %v144 = vunpack.c.l.b16 %v64
    %v145 = vunpack.c.l.b16 %v65
    %v146 = vunpack.c.l.b16 %v66
    %v147 = vunpack.c.l.b16 %v67
    %v148 = vunpack.c.l.b16 %v68
    %v149 = vunpack.c.l.b16 %v69
    %v150 = vunpack.c.l.b16 %v70
    %v151 = vunpack.c.l.b16 %v71
    %v152 = vunpack.c.l.b16 %v72
    %v153 = vunpack.c.l.b16 %v73
    %v154 = vunpack.c.l.b16 %v74
    %v155 = vunpack.c.l.b16 %v75
    %v156 = vunpack.c.l.b16 %v76
    %v157 = vunpack.c.l.b16 %v77
    %v158 = vunpack.c.l.b16 %v78
    %v159 = vpack.c.b16 %v144, %v143
    %v160 = vpack.c.b16 %v146, %v145
    %v161 = vpack.c.b16 %v148, %v147
    %v162 = vpack.c.b16 %v150, %v149
    %v163 = vpack.c.b16 %v152, %v151
    %v164 = vpack.c.b16 %v154, %v153
    %v165 = vpack.c.b16 %v156, %v155
    %v166 = vpack.c.b16 %v158, %v157
    %175 = vmatpush.bf16.msra.mxu0 %v166
    %176 = vmatpush.bf16.msra.mxu0 %v165
    %177 = vmatpush.bf16.msra.mxu0 %v164
    %178 = vmatpush.bf16.msra.mxu0 %v163
    %179 = vmatpush.bf16.msra.mxu0 %v162
    %180 = vmatpush.bf16.msra.mxu0 %v161
    %181 = vmatpush.bf16.msra.mxu0 %v160
    %182 = vmatpush.bf16.msra.mxu0 %v159
    %183 = vmatmul.bf16.gmra.mxu0 %v111
    %v184 = vpop.f32.mrf.mxu0
    %v185 = vadd.f32 0.0, %v184
    %v186 = vpop.f32.mrf.mxu0
    %v187 = vadd.f32 0.0, %v186
    %188 = vmatmul.bf16.gmra.mxu0 %v112
    %v189 = vpop.f32.mrf.mxu0
    %v190 = vadd.f32 0.0, %v189
    %v191 = vpop.f32.mrf.mxu0
    %v192 = vadd.f32 0.0, %v191
    %193 = vmatmul.bf16.gmra.mxu0 %v113
    %v194 = vpop.f32.mrf.mxu0
    %v195 = vadd.f32 0.0, %v194
    %v196 = vpop.f32.mrf.mxu0
    %v197 = vadd.f32 0.0, %v196
    %198 = vmatmul.bf16.gmra.mxu0 %v114
    %v199 = vpop.f32.mrf.mxu0
    %v200 = vadd.f32 0.0, %v199
    %v201 = vpop.f32.mrf.mxu0
    %v202 = vadd.f32 0.0, %v201
    %203 = vmatmul.bf16.gmra.mxu0 %v115
    %v204 = vpop.f32.mrf.mxu0
    %v205 = vadd.f32 0.0, %v204
    %v206 = vpop.f32.mrf.mxu0
    %v207 = vadd.f32 0.0, %v206
    %208 = vmatmul.bf16.gmra.mxu0 %v116
    %v209 = vpop.f32.mrf.mxu0
    %v210 = vadd.f32 0.0, %v209
    %v211 = vpop.f32.mrf.mxu0
    %v212 = vadd.f32 0.0, %v211
    %213 = vmatmul.bf16.gmra.mxu0 %v117
    %v214 = vpop.f32.mrf.mxu0
    %v215 = vadd.f32 0.0, %v214
    %v216 = vpop.f32.mrf.mxu0
    %v217 = vadd.f32 0.0, %v216
    %218 = vmatmul.bf16.gmra.mxu0 %v118
    %v219 = vpop.f32.mrf.mxu0
    %v220 = vadd.f32 0.0, %v219
    %v221 = vpop.f32.mrf.mxu0
    %v222 = vadd.f32 0.0, %v221
    %223 = vdwg.mxu0
    %224 = vst [vmem:[#allocation7] sm:$0xff] %v185
    %225 = vst [vmem:[#allocation7 + $0x8] sm:$0xff] %v187
    %226 = vst [vmem:[#allocation7 + $0x10] sm:$0xff] %v190
    %227 = vst [vmem:[#allocation7 + $0x18] sm:$0xff] %v192
    %228 = vst [vmem:[#allocation7 + $0x20] sm:$0xff] %v195
    %229 = vst [vmem:[#allocation7 + $0x28] sm:$0xff] %v197
    %230 = vst [vmem:[#allocation7 + $0x30] sm:$0xff] %v200
    %231 = vst [vmem:[#allocation7 + $0x38] sm:$0xff] %v202
    %232 = vst [vmem:[#allocation7 + $0x40] sm:$0xff] %v205
    %233 = vst [vmem:[#allocation7 + $0x48] sm:$0xff] %v207
    %234 = vst [vmem:[#allocation7 + $0x50] sm:$0xff] %v210
    %235 = vst [vmem:[#allocation7 + $0x58] sm:$0xff] %v212
    %236 = vst [vmem:[#allocation7 + $0x60] sm:$0xff] %v215
    %237 = vst [vmem:[#allocation7 + $0x68] sm:$0xff] %v217
    %238 = vst [vmem:[#allocation7 + $0x70] sm:$0xff] %v220
    %239 = vst [vmem:[#allocation7 + $0x78] sm:$0xff] %v222
    %v240 = vadd.f32 %v185, %v187
    %v241 = vadd.f32 %v240, %v190
    %v242 = vadd.f32 %v241, %v192
    %v243 = vadd.f32 %v242, %v195
    %v244 = vadd.f32 %v243, %v197
    %v245 = vadd.f32 %v244, %v200
    %v246 = vadd.f32 %v245, %v202
    %v247 = vadd.f32 %v246, %v205
    %v248 = vadd.f32 %v247, %v207
    %v249 = vadd.f32 %v248, %v210
    %v250 = vadd.f32 %v249, %v212
    %v251 = vadd.f32 %v250, %v215
    %v252 = vadd.f32 %v251, %v217
    %v253 = vadd.f32 %v252, %v220
    %v254 = vadd.f32 %v253, %v222
    %v255 = vrot.slane %v254, 4
    %v256 = vadd.f32 %v254, %v255
    %v257 = vrot.slane %v256, 2
    %v258 = vadd.f32 %v256, %v257
    %v259 = vrot.slane %v258, 1
    %v260 = vadd.f32 %v258, %v259
    %v261 = vmul.f32 %v260, 0.0078125
    %v262 = vsub.f32 %v185, %v261
    %v263 = vsub.f32 %v187, %v261
    %v264 = vsub.f32 %v190, %v261
    %v265 = vsub.f32 %v192, %v261
    %v266 = vsub.f32 %v195, %v261
    %v267 = vsub.f32 %v197, %v261
    %v268 = vsub.f32 %v200, %v261
    %v269 = vsub.f32 %v202, %v261
    %v270 = vsub.f32 %v205, %v261
    %v271 = vsub.f32 %v207, %v261
    %v272 = vsub.f32 %v210, %v261
    %v273 = vsub.f32 %v212, %v261
    %v274 = vsub.f32 %v215, %v261
    %v275 = vsub.f32 %v217, %v261
    %v276 = vsub.f32 %v220, %v261
    %v277 = vsub.f32 %v222, %v261
    %v278 = vmul.f32 %v262, %v262
    %v279 = vmul.f32 %v263, %v263
    %v280 = vmul.f32 %v264, %v264
    %v281 = vmul.f32 %v265, %v265
    %v282 = vmul.f32 %v266, %v266
    %v283 = vmul.f32 %v267, %v267
    %v284 = vmul.f32 %v268, %v268
    %v285 = vmul.f32 %v269, %v269
    %v286 = vmul.f32 %v270, %v270
    %v287 = vmul.f32 %v271, %v271
    %v288 = vmul.f32 %v272, %v272
    %v289 = vmul.f32 %v273, %v273
    %v290 = vmul.f32 %v274, %v274
    %v291 = vmul.f32 %v275, %v275
    %v292 = vmul.f32 %v276, %v276
    %v293 = vmul.f32 %v277, %v277
    %v294 = vadd.f32 %v278, %v279
    %v295 = vadd.f32 %v294, %v280
    %v296 = vadd.f32 %v295, %v281
    %v297 = vadd.f32 %v296, %v282
    %v298 = vadd.f32 %v297, %v283
    %v299 = vadd.f32 %v298, %v284
    %v300 = vadd.f32 %v299, %v285
    %v301 = vadd.f32 %v300, %v286
    %v302 = vadd.f32 %v301, %v287
    %v303 = vadd.f32 %v302, %v288
    %v304 = vadd.f32 %v303, %v289
    %v305 = vadd.f32 %v304, %v290
    %v306 = vadd.f32 %v305, %v291
    %v307 = vadd.f32 %v306, %v292
    %v308 = vadd.f32 %v307, %v293
    %v309 = vrot.slane %v308, 4
    %v310 = vadd.f32 %v308, %v309
    %v311 = vrot.slane %v310, 2
    %v312 = vadd.f32 %v310, %v311
    %v313 = vrot.slane %v312, 1
    %v314 = vadd.f32 %v312, %v313
    %315 = vst [vmem:[#allocation8] sm:$0x1] %v260
    %316 = vst [vmem:[#allocation8 + $0x1] sm:$0x1] %v314
    // Predicated region
    $region18: #{tpu_custom_call.1} parent=1 // pred_check
      _
    $region19: #{tpu_custom_call.1} parent=1 // pred_check_branch
      %318 = sbr.rel (0) target = $region21
    $region20: #{tpu_custom_call.1} parent=1 // pred_region
      %320 = vsyncadd [#allocation4], 0
      %s321 = sshll.u32 [#allocation7], 4
      %s322 = int_to_ptr.vmem [resolvable:$true] %s321
      %s323 = sshll.u32 %s2, 4
      %s324 = int_to_ptr.hbm [resolvable:$true] %s323
      %329 = dma.vmem_to_hbm [thread:$0]  %s322, 2048, %s324, [#allocation4], 128, 128, 8
    $region21: #{tpu_custom_call.1} parent=1 // pred_fallthru
      _
    // Predicated region
    $region22: #{tpu_custom_call.1} parent=1 // pred_check
      _
    $region23: #{tpu_custom_call.1} parent=1 // pred_check_branch
      %331 = sbr.rel (0) target = $region25
    $region24: #{tpu_custom_call.1} parent=1 // pred_region
      %333 = vsyncadd [#allocation9], 0
      %s335 = sshll.u32 [#allocation8], 4
      %s336 = int_to_ptr.vmem [resolvable:$true] %s335
      %s337 = sshll.u32 %s3, 4
      %s338 = int_to_ptr.hbm [resolvable:$true] %s337
      %340 = dma.vmem_to_hbm [thread:$0]  %s336, 32, %s338, [#allocation9]
    $region25: #{tpu_custom_call.1} parent=1 // pred_fallthru
      _
    // Predicated region
    $region26: #{tpu_custom_call.1} parent=1 // pred_check
      _
    $region27: #{tpu_custom_call.1} parent=1 // pred_check_branch
      %342 = sbr.rel (0) target = $region29
    $region28: #{tpu_custom_call.1} parent=1 // pred_region
      %344 = dma.done [#allocation4], 2048
    $region29: #{tpu_custom_call.1} parent=1 // pred_fallthru
      _
    // Predicated region
    $region30: #{tpu_custom_call.1} parent=1 // pred_check
      _
    $region31: #{tpu_custom_call.1} parent=1 // pred_check_branch
      %346 = sbr.rel (0) target = $region33
    $region32: #{tpu_custom_call.1} parent=1 // pred_region
      %348 = dma.done [#allocation9], 32
    $region33: #{tpu_custom_call.1} parent=1 // pred_fallthru
      _
    %349 = vsyncpa [#allocation3], 1
    %350 = vsyncpa [#allocation6], 1
    %351 = vsyncpa [#allocation4], 1
    %352 = vsyncpa [#allocation9], 1

</llo_original>
